<compile_context>
chip_gen: v5e
topology: v5e:2x2
jax: 0.10.0
libtpu: 0.0.40
codegen_flags: <defaults>
</compile_context>

<pallas_src>
import functools

import jax
import jax.numpy as jnp
from jax.experimental import pallas as pl
from jax.experimental.pallas import tpu as pltpu

HIDDEN = 128


def _round_up(x, m):
    return (x + m - 1) // m * m


def _classifier_kernel(h_ref, w1_ref, w_ref, p_ref, out_ref, *, out_dim):
    # h_ref  : (TB, in_dim)     bf16  activations (batch-row padded only)
    # w1_ref : (in_dim, 128)    bf16  layer-1 weights (un-padded K)
    # w_ref  : (2, 128, 128)    bf16  [w2, w3]
    # p_ref  : (R, 128)         f32   rows 0..2: b1,b2,b3; row 3: b4; rows 4..: w4^T
    # out_ref: (TB, out_dim)    f32   probabilities
    p = p_ref[...]

    # Layer 1: K = in_dim bf16 MXU matmul (no zero-padded K work), f32 accumulate.
    x = jnp.dot(h_ref[...], w1_ref[...],
                preferred_element_type=jnp.float32) + p[0][None, :]
    x = jnp.maximum(x, 0.0)

    # Layers 2, 3: 128x128 bf16 MXU matmuls, f32 bias + ReLU on the VPU.
    for i in range(2):
        z = jnp.dot(x.astype(jnp.bfloat16), w_ref[i],
                    preferred_element_type=jnp.float32) + p[i + 1][None, :]
        x = jnp.maximum(z, 0.0)

    # Output layer (out_dim is tiny): VPU multiply + XLU lane reduction per output,
    # fused into one lane-packed store.  Numerically stable sigmoid on the EUP.
    # TODO(synk): for large output_dim, replace this per-output reduction loop with a
    # single (TB,128)@(128,out_dim) MXU matmul to avoid serializing on the XLU.
    cols = []
    for o in range(out_dim):
        w4_row = p[4 + o][None, :]                                        # (1, 128)
        logit = jnp.sum(x * w4_row, axis=-1, keepdims=True) + p[3:4, o:o + 1]
        cols.append(logit)                                                # (TB, 1)
    logits = cols[0] if out_dim == 1 else jnp.concatenate(cols, axis=-1)  # (TB, out_dim)
    out_ref[...] = jax.nn.sigmoid(logits)


def pack_params(params):
    """Pack the 8 parameter arrays into three DMA-friendly operands.

    Call ONCE at model-load time and reuse the result: per-call re-packing is pure
    launch/HBM overhead for weights that are static at inference.
    """
    (w1, b1), (w2, b2), (w3, b3), (w4, b4) = params
    out_dim = w4.shape[1]
    assert out_dim <= HIDDEN, "output_dim > 128 not supported by the packed layout"

    W1 = jnp.asarray(w1, jnp.bfloat16)                        # (in_dim, 128) bf16
    W = jnp.stack([w2, w3]).astype(jnp.bfloat16)              # (2, 128, 128) bf16

    R = _round_up(4 + out_dim, 8)
    P = jnp.zeros((R, HIDDEN), jnp.float32)
    P = P.at[0, :].set(b1.reshape(-1))
    P = P.at[1, :].set(b2.reshape(-1))
    P = P.at[2, :].set(b3.reshape(-1))
    P = P.at[3, :out_dim].set(b4.reshape(-1))
    P = P.at[4:4 + out_dim, :].set(w4.T)                      # (out_dim, 128)
    return W1, W, P


def classifier_forward(h, W1, W, P, *, out_dim):
    """h: (B, input_dim) float32. Returns probs: (B, out_dim) float32."""
    B, in_dim = h.shape
    assert in_dim == W1.shape[0]

    # Batch tiling: single tile for small/medium B (overhead-bound: one grid step,
    # one core); 1024-row tiles for large B (multiple of 256 -> full MXU M passes,
    # multiple of 16 for bf16 sublanes) with a parallel grid for megacore sharding.
    if B > 1024:
        TB = 1024
    else:
        TB = max(_round_up(B, 16), 16)
    Bp = _round_up(B, TB)

    # Minimal activation stream: bf16, batch-row padding only.
    h_bf16 = h.astype(jnp.bfloat16)
    if Bp != B:
        h_bf16 = jnp.zeros((Bp, in_dim), jnp.bfloat16).at[:B, :].set(h_bf16)

    flops = 2 * Bp * (in_dim * HIDDEN + 2 * HIDDEN * HIDDEN + HIDDEN * out_dim)
    bytes_accessed = (h_bf16.size * 2 + W1.size * 2 + W.size * 2 + P.size * 4
                      + Bp * out_dim * 4)

    out = pl.pallas_call(
        functools.partial(_classifier_kernel, out_dim=out_dim),
        out_shape=jax.ShapeDtypeStruct((Bp, out_dim), jnp.float32),
        grid=(Bp // TB,),
        in_specs=[
            pl.BlockSpec((TB, in_dim), lambda i: (i, 0)),            # activations: per-tile
            pl.BlockSpec((in_dim, HIDDEN), lambda i: (0, 0)),        # w1: VMEM-resident
            pl.BlockSpec((2, HIDDEN, HIDDEN), lambda i: (0, 0, 0)),  # w2,w3: VMEM-resident
            pl.BlockSpec(P.shape, lambda i: (0, 0)),                 # biases + w4^T: resident
        ],
        out_specs=pl.BlockSpec((TB, out_dim), lambda i: (i, 0)),
        compiler_params=pltpu.CompilerParams(dimension_semantics=("parallel",)),
        cost_estimate=pl.CostEstimate(flops=flops,
                                      transcendentals=Bp * out_dim,
                                      bytes_accessed=bytes_accessed),
    )(h_bf16, W1, W, P)
    return out[:B]


def init_params(key, input_dim, output_dim, hidden=HIDDEN):
    """Deterministic synthetic init (PyTorch-Linear-like uniform fan-in)."""
    def linear(k, fan_in, fan_out):
        kw, kb = jax.random.split(k)
        bound = 1.0 / jnp.sqrt(fan_in)
        w = jax.random.uniform(kw, (fan_in, fan_out), jnp.float32, -bound, bound)
        b = jax.random.uniform(kb, (1, fan_out), jnp.float32, -bound, bound)
        return w, b

    k1, k2, k3, k4 = jax.random.split(key, 4)
    return (linear(k1, input_dim, hidden),
            linear(k2, hidden, hidden),
            linear(k3, hidden, hidden),
            linear(k4, hidden, output_dim))


if __name__ == "__main__":
    # Module config implies: latent_dim = dims[-1] (e.g. 32), output_dim from options.
    batch = 8
    input_dim = 32
    output_dim = 1

    key = jax.random.PRNGKey(0)
    k_h, k_p = jax.random.split(key)

    h = jax.random.normal(k_h, (batch, input_dim), jnp.float32)
    params = init_params(k_p, input_dim, output_dim)

    # Pack parameters ONCE (model-load time) and reuse across forward calls.
    W1, W, P = pack_params(params)
    forward = jax.jit(functools.partial(classifier_forward, out_dim=output_dim))

    probs = forward(h, W1, W, P)
    probs = jax.block_until_ready(probs)

    # Pure-JAX reference matching the kernel's math (bf16 MXU inputs, f32 accumulate,
    # f32 output layer + sigmoid).
    (w1, b1), (w2, b2), (w3, b3), (w4, b4) = params

    def bf16_dot(a, w):
        return jnp.dot(a.astype(jnp.bfloat16), w.astype(jnp.bfloat16),
                       preferred_element_type=jnp.float32)

    x = jnp.maximum(bf16_dot(h, w1) + b1, 0.0)
    x = jnp.maximum(bf16_dot(x, w2) + b2, 0.0)
    x = jnp.maximum(bf16_dot(x, w3) + b3, 0.0)
    ref = jax.nn.sigmoid(x @ w4 + b4)

    assert probs.shape == (batch, output_dim)
    assert jnp.allclose(probs, ref, atol=1e-2, rtol=1e-2)
    print("KERNEL_OK")
</pallas_src>

<mosaic_0001>
module attributes {stable_mosaic.version = 11 : i64} {
  func.func @_classifier_kernel(%arg0: i32, %arg1: memref<16x32xbf16, #tpu.memory_space<vmem>>, %arg2: memref<32x128xbf16, #tpu.memory_space<vmem>>, %arg3: memref<2x128x128xbf16, #tpu.memory_space<vmem>>, %arg4: memref<8x128xf32, #tpu.memory_space<vmem>>, %arg5: memref<16x1xf32, #tpu.memory_space<vmem>>) attributes {dimension_semantics = [#tpu.dimension_semantics<parallel>], iteration_bounds = array<i64: 1>, scalar_prefetch = 0 : i64, scratch_operands = 0 : i64, tpu.core_type = #tpu.core_type<tc>, window_params = [{transform_indices = @transform_0, window_bounds = array<i64: 16, 32>}, {pipeline_mode = #tpu.pipeline_mode<synchronous>, transform_indices = @transform_1, window_bounds = array<i64: 32, 128>}, {pipeline_mode = #tpu.pipeline_mode<synchronous>, transform_indices = @transform_2, window_bounds = array<i64: 2, 128, 128>}, {pipeline_mode = #tpu.pipeline_mode<synchronous>, transform_indices = @transform_3, window_bounds = array<i64: 8, 128>}, {transform_indices = @transform_4, window_bounds = array<i64: 16, 1>}]} {
    %c0 = arith.constant 0 : index
    %c0_0 = arith.constant 0 : index
    %0 = vector.load %arg4[%c0, %c0_0] : memref<8x128xf32, #tpu.memory_space<vmem>>, vector<8x128xf32>
    %c0_1 = arith.constant 0 : index
    %c0_2 = arith.constant 0 : index
    %1 = vector.load %arg1[%c0_1, %c0_2] : memref<16x32xbf16, #tpu.memory_space<vmem>>, vector<16x32xbf16>
    %c0_3 = arith.constant 0 : index
    %c0_4 = arith.constant 0 : index
    %2 = vector.load %arg2[%c0_3, %c0_4] : memref<32x128xbf16, #tpu.memory_space<vmem>>, vector<32x128xbf16>
    %cst = arith.constant dense<0.000000e+00> : vector<16x128xf32>
    %3 = tpu.matmul %1, %2, %cst {dimension_numbers = #tpu.dot_dimension_numbers<[1], [0], [0], [1], [0, 0, 1, 1], [], []>} : vector<16x32xbf16>, vector<32x128xbf16>, vector<16x128xf32> -> vector<16x128xf32>
    %4 = vector.extract_strided_slice %0 {offsets = [0, 0], sizes = [1, 128], strides = [1, 1]} : vector<8x128xf32> to vector<1x128xf32>
    %5 = vector.shape_cast %4 : vector<1x128xf32> to vector<128xf32>
    %6 = vector.shape_cast %5 : vector<128xf32> to vector<1x128xf32>
    %7 = vector.broadcast %6 : vector<1x128xf32> to vector<16x128xf32>
    %8 = arith.addf %3, %7 : vector<16x128xf32>
    %cst_5 = arith.constant 0.000000e+00 : f32
    %9 = vector.broadcast %cst_5 : f32 to vector<16x128xf32>
    %10 = arith.maximumf %8, %9 : vector<16x128xf32>
    %11 = arith.truncf %10 : vector<16x128xf32> to vector<16x128xbf16>
    %c0_6 = arith.constant 0 : index
    %c0_7 = arith.constant 0 : index
    %c0_8 = arith.constant 0 : index
    %12 = vector.load %arg3[%c0_6, %c0_7, %c0_8] : memref<2x128x128xbf16, #tpu.memory_space<vmem>>, vector<1x128x128xbf16>
    %13 = vector.shape_cast %12 : vector<1x128x128xbf16> to vector<128x128xbf16>
    %cst_9 = arith.constant dense<0.000000e+00> : vector<16x128xf32>
    %14 = tpu.matmul %11, %13, %cst_9 {dimension_numbers = #tpu.dot_dimension_numbers<[1], [0], [0], [1], [0, 0, 1, 1], [], []>} : vector<16x128xbf16>, vector<128x128xbf16>, vector<16x128xf32> -> vector<16x128xf32>
    %15 = vector.extract_strided_slice %0 {offsets = [1, 0], sizes = [1, 128], strides = [1, 1]} : vector<8x128xf32> to vector<1x128xf32>
    %16 = vector.shape_cast %15 : vector<1x128xf32> to vector<128xf32>
    %17 = vector.shape_cast %16 : vector<128xf32> to vector<1x128xf32>
    %18 = vector.broadcast %17 : vector<1x128xf32> to vector<16x128xf32>
    %19 = arith.addf %14, %18 : vector<16x128xf32>
    %cst_10 = arith.constant 0.000000e+00 : f32
    %20 = vector.broadcast %cst_10 : f32 to vector<16x128xf32>
    %21 = arith.maximumf %19, %20 : vector<16x128xf32>
    %22 = arith.truncf %21 : vector<16x128xf32> to vector<16x128xbf16>
    %c1 = arith.constant 1 : index
    %c0_11 = arith.constant 0 : index
    %c0_12 = arith.constant 0 : index
    %23 = vector.load %arg3[%c1, %c0_11, %c0_12] : memref<2x128x128xbf16, #tpu.memory_space<vmem>>, vector<1x128x128xbf16>
    %24 = vector.shape_cast %23 : vector<1x128x128xbf16> to vector<128x128xbf16>
    %cst_13 = arith.constant dense<0.000000e+00> : vector<16x128xf32>
    %25 = tpu.matmul %22, %24, %cst_13 {dimension_numbers = #tpu.dot_dimension_numbers<[1], [0], [0], [1], [0, 0, 1, 1], [], []>} : vector<16x128xbf16>, vector<128x128xbf16>, vector<16x128xf32> -> vector<16x128xf32>
    %26 = vector.extract_strided_slice %0 {offsets = [2, 0], sizes = [1, 128], strides = [1, 1]} : vector<8x128xf32> to vector<1x128xf32>
    %27 = vector.shape_cast %26 : vector<1x128xf32> to vector<128xf32>
    %28 = vector.shape_cast %27 : vector<128xf32> to vector<1x128xf32>
    %29 = vector.broadcast %28 : vector<1x128xf32> to vector<16x128xf32>
    %30 = arith.addf %25, %29 : vector<16x128xf32>
    %cst_14 = arith.constant 0.000000e+00 : f32
    %31 = vector.broadcast %cst_14 : f32 to vector<16x128xf32>
    %32 = arith.maximumf %30, %31 : vector<16x128xf32>
    %33 = vector.extract_strided_slice %0 {offsets = [4, 0], sizes = [1, 128], strides = [1, 1]} : vector<8x128xf32> to vector<1x128xf32>
    %34 = vector.shape_cast %33 : vector<1x128xf32> to vector<128xf32>
    %35 = vector.shape_cast %34 : vector<128xf32> to vector<1x128xf32>
    %36 = vector.broadcast %35 : vector<1x128xf32> to vector<16x128xf32>
    %37 = arith.mulf %32, %36 : vector<16x128xf32>
    %cst_15 = arith.constant dense<0.000000e+00> : vector<16xf32>
    %38 = vector.multi_reduction <add>, %37, %cst_15 [1] : vector<16x128xf32> to vector<16xf32>
    %39 = vector.shape_cast %38 : vector<16xf32> to vector<16x1xf32>
    %40 = vector.extract_strided_slice %0 {offsets = [3, 0], sizes = [1, 1], strides = [1, 1]} : vector<8x128xf32> to vector<1x1xf32>
    %41 = vector.broadcast %40 : vector<1x1xf32> to vector<16x1xf32>
    %42 = arith.addf %39, %41 : vector<16x1xf32>
    %43 = arith.negf %42 : vector<16x1xf32>
    %44 = math.exp %43 : vector<16x1xf32>
    %cst_16 = arith.constant 1.000000e+00 : f32
    %45 = vector.broadcast %cst_16 : f32 to vector<16x1xf32>
    %46 = arith.addf %45, %44 : vector<16x1xf32>
    %47 = arith.divf %45, %46 : vector<16x1xf32>
    %c0_17 = arith.constant 0 : index
    %c0_18 = arith.constant 0 : index
    %48 = vector.load %arg5[%c0_17, %c0_18] : memref<16x1xf32, #tpu.memory_space<vmem>>, vector<16x1xf32>
    tpu.vector_store %arg5[%c0_17, %c0_18], %47 {strides = array<i32>} : memref<16x1xf32, #tpu.memory_space<vmem>>, vector<16x1xf32>,
    return
  }
  func.func @transform_0(%arg0: i32) -> (i32, i32) {
    %c0_i32 = arith.constant 0 : i32
    %c0_i32_0 = arith.constant 0 : i32
    return %arg0, %c0_i32 : i32, i32
  }
  func.func @transform_1(%arg0: i32) -> (i32, i32) {
    %c0_i32 = arith.constant 0 : i32
    %c0_i32_0 = arith.constant 0 : i32
    %c0_i32_1 = arith.constant 0 : i32
    return %c0_i32, %c0_i32_0 : i32, i32
  }
  func.func @transform_2(%arg0: i32) -> (i32, i32, i32) {
    %c0_i32 = arith.constant 0 : i32
    %c0_i32_0 = arith.constant 0 : i32
    %c0_i32_1 = arith.constant 0 : i32
    %c0_i32_2 = arith.constant 0 : i32
    return %c0_i32, %c0_i32_0, %c0_i32_1 : i32, i32, i32
  }
  func.func @transform_3(%arg0: i32) -> (i32, i32) {
    %c0_i32 = arith.constant 0 : i32
    %c0_i32_0 = arith.constant 0 : i32
    %c0_i32_1 = arith.constant 0 : i32
    return %c0_i32, %c0_i32_0 : i32, i32
  }
  func.func @transform_4(%arg0: i32) -> (i32, i32) {
    %c0_i32 = arith.constant 0 : i32
    %c0_i32_0 = arith.constant 0 : i32
    return %arg0, %c0_i32 : i32, i32
  }
}

</mosaic_0001>

<llo_original>
// kernel: classifier_forward.1
$region0: #{classifier_forward.1}
  #allocation0 [shape = 'u32[]', space=smem, size = 0x4, offset = 0x4, fixed_abs, tag = 'smem constant byte address 0x4 - core index']
  #allocation1 [shape = 'u32[72,128]{1,0:T(1,128)}', space=vmem, size = 0x9000, scoped, tag = 'internal scratch']
  %s0 = inlined_call_operand.vmem [shape: bf16[16,32], index: 0, kind: input, shape index: {}]
  %s1 = inlined_call_operand.vmem [shape: bf16[32,128], index: 1, kind: input, shape index: {}]
  %s2 = inlined_call_operand.hbm [shape: bf16[2,128,128], index: 2, kind: input, shape index: {}]
  %s3 = inlined_call_operand.vmem [shape: f32[8,128], index: 3, kind: input, shape index: {}]
  %s4 = inlined_call_operand.vmem [shape: f32[16,1], index: 4, kind: output, shape index: {}]
  %s5 = sld [smem:[#allocation0]]
  $region30: #{classifier_forward.1} parent=0
    _
  %s7 = ssub.s32 1, %s5
  %s8 = scalar_select 0, %s7, %s5
  $region1: #{classifier_forward.1} parent=0
    #allocation2 [shape = 'u8[65536]{0}', space=vmem, size = 0x10000, scoped, tag = 'input window, operand 2, single buffered']
    #allocation3 [shape = 's32[1]{0}', space=sflag, size = 0x4, scoped, tag = 'scoped memory for classifier_forward.1']
    %9 = vsyncpa [#allocation3], 0
    // Predicated region
    $region2: #{classifier_forward.1} parent=1 // pred_check
      _
    $region3: #{classifier_forward.1} parent=1 // pred_check_branch
      %11 = sbr.rel (0) target = $region5
    $region4: #{classifier_forward.1} parent=1 // pred_region
      _
    $region5: #{classifier_forward.1} parent=1 // pred_fallthru
      _
    // Predicated region
    $region6: #{classifier_forward.1} parent=1 // pred_check
      _
    $region7: #{classifier_forward.1} parent=1 // pred_check_branch
      %13 = sbr.rel (0) target = $region9
    $region8: #{classifier_forward.1} parent=1 // pred_region
      _
    $region9: #{classifier_forward.1} parent=1 // pred_fallthru
      _
    // Predicated region
    $region10: #{classifier_forward.1} parent=1 // pred_check
      _
    $region11: #{classifier_forward.1} parent=1 // pred_check_branch
      %15 = sbr.rel (0) target = $region13
    $region12: #{classifier_forward.1} parent=1 // pred_region
      %17 = vsyncadd [#allocation3], 0
      %s18 = sshll.u32 %s2, 4
      %s19 = int_to_ptr.hbm [resolvable:$true] %s18
      %s20 = sshll.u32 [#allocation2], 4
      %s21 = int_to_ptr.vmem [resolvable:$true] %s20
      %26 = dma.hbm_to_vmem [thread:$0]  %s19, 2048, %s21, [#allocation3], 64, 64, 4
    $region13: #{classifier_forward.1} parent=1 // pred_fallthru
      _
    // Predicated region
    $region14: #{classifier_forward.1} parent=1 // pred_check
      _
    $region15: #{classifier_forward.1} parent=1 // pred_check_branch
      %28 = sbr.rel (0) target = $region17
    $region16: #{classifier_forward.1} parent=1 // pred_region
      _
    $region17: #{classifier_forward.1} parent=1 // pred_fallthru
      _
    // Predicated region
    $region18: #{classifier_forward.1} parent=1 // pred_check
      _
    $region19: #{classifier_forward.1} parent=1 // pred_check_branch
      %30 = sbr.rel (0) target = $region21
    $region20: #{classifier_forward.1} parent=1 // pred_region
      %32 = dma.done [#allocation3], 2048
    $region21: #{classifier_forward.1} parent=1 // pred_fallthru
      _
    %v34 = vld [vmem:[%s3] sm:$0xff]
    %v35 = vld [vmem:[%s0] sm:$0xf]
    %v36 = vld [vmem:[%s0 + $0x4] sm:$0xf]
    %v37 = vld [vmem:[%s1] sm:$0xf]
    %v38 = vld [vmem:[%s1 + $0x4] sm:$0xf]
    %v39 = vld [vmem:[%s1 + $0x8] sm:$0xf]
    %v40 = vld [vmem:[%s1 + $0xc] sm:$0xf]
    %v41 = vperm.slane %v34, 0
    %v44 = vunpack.c.l.b16 %v35
    %v45 = vunpack.c.l.b16 %v36
    %v46 = vpack.c.b16 %v45, %v44
    %v51 = vunpack.c.l.b16 %v37
    %v52 = vunpack.c.l.b16 %v38
    %v53 = vunpack.c.l.b16 %v39
    %v54 = vunpack.c.l.b16 %v40
    %v55 = vpack.c.b16 %v52, %v51
    %v56 = vpack.c.b16 %v54, %v53
    %vm59 = vcmask 261120
    %v61 = vsel %vm59, %v46, 0
    %63 = vmatpush.bf16.msra.mxu0 0
    %64 = vmatpush.bf16.msra.mxu0 0
    %65 = vmatpush.bf16.msra.mxu0 0
    %66 = vmatpush.bf16.msra.mxu0 0
    %67 = vmatpush.bf16.msra.mxu0 0
    %68 = vmatpush.bf16.msra.mxu0 0
    %69 = vmatpush.bf16.msra.mxu0 %v56
    %70 = vmatpush.bf16.msra.mxu0 %v55
    %71 = vmatmul.bf16.gmra.mxu0 %v61
    %v72 = vpop.f32.mrf.mxu0
    %v73 = vadd.f32 %v41, %v72
    %v74 = vpop.f32.mrf.mxu0
    %v75 = vadd.f32 %v41, %v74
    %76 = vdwg.mxu0
    %v77 = vmax.f32 %v73, 0.0
    %v78 = vmax.f32 %v75, 0.0
    %v79 = vpack.c.bf16 %v78, %v77
    %v80 = vld [vmem:[#allocation2] sm:$0xf]
    %v81 = vld [vmem:[#allocation2 + $0x4] sm:$0xf]
    %v82 = vld [vmem:[#allocation2 + $0x8] sm:$0xf]
    %v83 = vld [vmem:[#allocation2 + $0xc] sm:$0xf]
    %v84 = vld [vmem:[#allocation2 + $0x10] sm:$0xf]
    %v85 = vld [vmem:[#allocation2 + $0x14] sm:$0xf]
    %v86 = vld [vmem:[#allocation2 + $0x18] sm:$0xf]
    %v87 = vld [vmem:[#allocation2 + $0x1c] sm:$0xf]
    %v88 = vld [vmem:[#allocation2 + $0x20] sm:$0xf]
    %v89 = vld [vmem:[#allocation2 + $0x24] sm:$0xf]
    %v90 = vld [vmem:[#allocation2 + $0x28] sm:$0xf]
    %v91 = vld [vmem:[#allocation2 + $0x2c] sm:$0xf]
    %v92 = vld [vmem:[#allocation2 + $0x30] sm:$0xf]
    %v93 = vld [vmem:[#allocation2 + $0x34] sm:$0xf]
    %v94 = vld [vmem:[#allocation2 + $0x38] sm:$0xf]
    %v95 = vld [vmem:[#allocation2 + $0x3c] sm:$0xf]
    %v96 = vperm.slane %v34, 1
    %v113 = vunpack.c.l.b16 %v80
    %v114 = vunpack.c.l.b16 %v81
    %v115 = vunpack.c.l.b16 %v82
    %v116 = vunpack.c.l.b16 %v83
    %v117 = vunpack.c.l.b16 %v84
    %v118 = vunpack.c.l.b16 %v85
    %v119 = vunpack.c.l.b16 %v86
    %v120 = vunpack.c.l.b16 %v87
    %v121 = vunpack.c.l.b16 %v88
    %v122 = vunpack.c.l.b16 %v89
    %v123 = vunpack.c.l.b16 %v90
    %v124 = vunpack.c.l.b16 %v91
    %v125 = vunpack.c.l.b16 %v92
    %v126 = vunpack.c.l.b16 %v93
    %v127 = vunpack.c.l.b16 %v94
    %v128 = vunpack.c.l.b16 %v95
    %v129 = vpack.c.b16 %v114, %v113
    %v130 = vpack.c.b16 %v116, %v115
    %v131 = vpack.c.b16 %v118, %v117
    %v132 = vpack.c.b16 %v120, %v119
    %v133 = vpack.c.b16 %v122, %v121
    %v134 = vpack.c.b16 %v124, %v123
    %v135 = vpack.c.b16 %v126, %v125
    %v136 = vpack.c.b16 %v128, %v127
    %145 = vmatpush.bf16.msra.mxu0 %v136
    %146 = vmatpush.bf16.msra.mxu0 %v135
    %147 = vmatpush.bf16.msra.mxu0 %v134
    %148 = vmatpush.bf16.msra.mxu0 %v133
    %149 = vmatpush.bf16.msra.mxu0 %v132
    %150 = vmatpush.bf16.msra.mxu0 %v131
    %151 = vmatpush.bf16.msra.mxu0 %v130
    %152 = vmatpush.bf16.msra.mxu0 %v129
    %153 = vmatmul.bf16.gmra.mxu0 %v79
    %v154 = vpop.f32.mrf.mxu0
    %v155 = vadd.f32 %v96, %v154
    %v156 = vpop.f32.mrf.mxu0
    %v157 = vadd.f32 %v96, %v156
    %158 = vdwg.mxu0
    %v159 = vmax.f32 %v155, 0.0
    %v160 = vmax.f32 %v157, 0.0
    %v161 = vpack.c.bf16 %v160, %v159
    %s162 = scalar_lea.vmem [#allocation2], 64
    %v163 = vld [vmem:[%s162] sm:$0xf]
    %v164 = vld [vmem:[%s162 + $0x4] sm:$0xf]
    %v165 = vld [vmem:[%s162 + $0x8] sm:$0xf]
    %v166 = vld [vmem:[%s162 + $0xc] sm:$0xf]
    %v167 = vld [vmem:[%s162 + $0x10] sm:$0xf]
    %v168 = vld [vmem:[%s162 + $0x14] sm:$0xf]
    %v169 = vld [vmem:[%s162 + $0x18] sm:$0xf]
    %v170 = vld [vmem:[%s162 + $0x1c] sm:$0xf]
    %v171 = vld [vmem:[%s162 + $0x20] sm:$0xf]
    %v172 = vld [vmem:[%s162 + $0x24] sm:$0xf]
    %v173 = vld [vmem:[%s162 + $0x28] sm:$0xf]
    %v174 = vld [vmem:[%s162 + $0x2c] sm:$0xf]
    %v175 = vld [vmem:[%s162 + $0x30] sm:$0xf]
    %v176 = vld [vmem:[%s162 + $0x34] sm:$0xf]
    %v177 = vld [vmem:[%s162 + $0x38] sm:$0xf]
    %v178 = vld [vmem:[%s162 + $0x3c] sm:$0xf]
    %v179 = vperm.slane %v34, 2
    %v196 = vunpack.c.l.b16 %v163
    %v197 = vunpack.c.l.b16 %v164
    %v198 = vunpack.c.l.b16 %v165
    %v199 = vunpack.c.l.b16 %v166
    %v200 = vunpack.c.l.b16 %v167
    %v201 = vunpack.c.l.b16 %v168
    %v202 = vunpack.c.l.b16 %v169
    %v203 = vunpack.c.l.b16 %v170
    %v204 = vunpack.c.l.b16 %v171
    %v205 = vunpack.c.l.b16 %v172
    %v206 = vunpack.c.l.b16 %v173
    %v207 = vunpack.c.l.b16 %v174
    %v208 = vunpack.c.l.b16 %v175
    %v209 = vunpack.c.l.b16 %v176
    %v210 = vunpack.c.l.b16 %v177
    %v211 = vunpack.c.l.b16 %v178
    %v212 = vpack.c.b16 %v197, %v196
    %v213 = vpack.c.b16 %v199, %v198
    %v214 = vpack.c.b16 %v201, %v200
    %v215 = vpack.c.b16 %v203, %v202
    %v216 = vpack.c.b16 %v205, %v204
    %v217 = vpack.c.b16 %v207, %v206
    %v218 = vpack.c.b16 %v209, %v208
    %v219 = vpack.c.b16 %v211, %v210
    %228 = vmatpush.bf16.msra.mxu0 %v219
    %229 = vmatpush.bf16.msra.mxu0 %v218
    %230 = vmatpush.bf16.msra.mxu0 %v217
    %231 = vmatpush.bf16.msra.mxu0 %v216
    %232 = vmatpush.bf16.msra.mxu0 %v215
    %233 = vmatpush.bf16.msra.mxu0 %v214
    %234 = vmatpush.bf16.msra.mxu0 %v213
    %235 = vmatpush.bf16.msra.mxu0 %v212
    %236 = vmatmul.bf16.gmra.mxu0 %v161
    %v237 = vpop.f32.mrf.mxu0
    %v238 = vadd.f32 %v179, %v237
    %v239 = vpop.f32.mrf.mxu0
    %v240 = vadd.f32 %v179, %v239
    %241 = vdwg.mxu0
    %v242 = vmax.f32 %v238, 0.0
    %v243 = vmax.f32 %v240, 0.0
    %v244 = vperm.slane %v34, 4
    %v245 = vmul.f32 %v242, %v244
    %v246 = vmul.f32 %v243, %v244
    %247 = vadd.xlane.f32.xlu0 %v245
    %v248 = vpop.xlane.xlu0 %247
    %249 = vadd.xlane.f32.xlu0 %v246
    %v250 = vpop.xlane.xlu0 %249
    %v251 = vperm.slane %v34, 3
    %v252 = vadd.f32 %v248, %v251
    %v253 = vadd.f32 %v250, %v251
    %v254 = vxor.u32 %v252, 2147483648
    %v255 = vxor.u32 %v253, 2147483648
    %v256 = vmul.f32 %v254, 1.442695
    %v257 = vpow.pop %v256
    %v258 = vmul.f32 %v255, 1.442695
    %v259 = vpow.pop %v258
    %v260 = vadd.f32 %v257, 1.0
    %v261 = vadd.f32 %v259, 1.0
    %v262 = vrcp.pop %v260
    %v263 = vmul.f32 %v260, %v262
    %v264 = vsub.f32 1.0, %v263
    %v265 = vmul.f32 %v262, %v264
    %v266 = vadd.f32 %v262, %v265
    %vm267 = vweird.f32 %v260
    %vm268 = vweird.f32 %v262
    %vm269 = vmor %vm267, %vm268
    %v270 = vsel %vm269, %v262, %v266
    %v271 = vand.u32 2147483647, %v260
    %vm272 = vcmp.eq.f32.partialorder %v271, 8.507059e+37
    %v273 = vand.u32 %v260, 2147483648
    %v274 = vor.u32 1.1754944e-38, %v273
    %v275 = vsel %vm272, %v274, %v270
    %v276 = vmul.f32 1.0, %v275
    %v277 = vrcp.pop %v261
    %v278 = vmul.f32 %v261, %v277
    %v279 = vsub.f32 1.0, %v278
    %v280 = vmul.f32 %v277, %v279
    %v281 = vadd.f32 %v277, %v280
    %vm282 = vweird.f32 %v261
    %vm283 = vweird.f32 %v277
    %vm284 = vmor %vm282, %vm283
    %v285 = vsel %vm284, %v277, %v281
    %v286 = vand.u32 2147483647, %v261
    %vm287 = vcmp.eq.f32.partialorder %v286, 8.507059e+37
    %v288 = vand.u32 %v261, 2147483648
    %v289 = vor.u32 1.1754944e-38, %v288
    %v290 = vsel %vm287, %v289, %v285
    %v291 = vmul.f32 1.0, %v290
    %vm292 = vcmask 7168
    %293 = vst.msk [vmem:[%s4] sm:$0xff] %vm292, %v276
    %294 = vst.msk [vmem:[%s4 + $0x8] sm:$0xff] %vm292, %v291
    // Predicated region
    $region22: #{classifier_forward.1} parent=1 // pred_check
      _
    $region23: #{classifier_forward.1} parent=1 // pred_check_branch
      %296 = sbr.rel (0) target = $region25
    $region24: #{classifier_forward.1} parent=1 // pred_region
      _
    $region25: #{classifier_forward.1} parent=1 // pred_fallthru
      _
    // Predicated region
    $region26: #{classifier_forward.1} parent=1 // pred_check
      _
    $region27: #{classifier_forward.1} parent=1 // pred_check_branch
      %298 = sbr.rel (0) target = $region29
    $region28: #{classifier_forward.1} parent=1 // pred_region
      _
    $region29: #{classifier_forward.1} parent=1 // pred_fallthru
      _
    %299 = vsyncpa [#allocation3], 1

</llo_original>
